<compile_context>
chip_gen: v5e
topology: v5e:2x2
jax: 0.10.0
libtpu: 0.0.40
codegen_flags: <defaults>
</compile_context>

<pallas_src>
import functools

import jax
import jax.numpy as jnp
from jax.experimental import pallas as pl
from jax.experimental.pallas import tpu as pltpu

LANE = 128  # lane width; feature dims are zero-padded to a multiple of this.


# ----------------------------------------------------------------------------
# Pallas kernel: one GCN layer  out = relu(A @ (H W) + shift [+ res] [+ skip])
# Grid: (row tiles of A, K tiles over N).  acc_ref is a resident f32 scratch.
# ----------------------------------------------------------------------------
def _gcn_layer_kernel(a_ref, hk_ref, w_ref, sh_ref, out_ref, acc_ref, *,
                      add_diag_residual, add_diag_skip):
    f32, bf16 = jnp.float32, jnp.bfloat16
    i = pl.program_id(0)
    k = pl.program_id(1)
    dout = out_ref.shape[-1]

    @pl.when(k == 0)
    def _():
        acc_ref[...] = jnp.zeros_like(acc_ref)

    # Pre-projection of this K tile of H_prev.  For layer 2, w_ref = [W2'|Wr]
    # so one full 256-wide MXU push gives both the propagated half (left) and
    # the residual half (right).
    c = jnp.dot(hk_ref[...], w_ref[...], preferred_element_type=f32)
    acc_ref[...] += jnp.dot(a_ref[...], c[:, :dout].astype(bf16),
                            preferred_element_type=f32)

    if add_diag_residual or add_diag_skip:
        # Residual projection / skip connection act per-row, i.e. only on the
        # diagonal (k == i) tile.  Requires tm == tk (asserted in the wrapper).
        @pl.when(k == i)
        def _():
            if add_diag_residual:
                acc_ref[...] += c[:, dout:]
            if add_diag_skip:
                acc_ref[...] += hk_ref[...].astype(f32)

    @pl.when(k == pl.num_programs(1) - 1)
    def _():
        out_ref[...] = jnp.maximum(acc_ref[...] + sh_ref[...], 0.0
                                   ).astype(out_ref.dtype)


# ----------------------------------------------------------------------------
# Per-layer pallas_call wrapper.
# ----------------------------------------------------------------------------
def _physical_vmem_bytes():
    try:
        return int(pltpu.get_tpu_info().vmem_capacity_bytes)
    except Exception:
        return 64 * 1024 * 1024  # conservative (v7x per-TC VMEM)


def _gcn_layer_call(a, h, w, sh, *, dout, tm, add_diag_residual=False,
                    add_diag_skip=False, out_dtype=jnp.bfloat16):
    n_pad = a.shape[0]
    din = h.shape[1]
    wcols = w.shape[1]
    assert n_pad % tm == 0
    i_tiles = n_pad // tm
    k_tiles = n_pad // tm  # tm == tk (needed for the diagonal residual/skip)

    kernel = functools.partial(_gcn_layer_kernel,
                               add_diag_residual=add_diag_residual,
                               add_diag_skip=add_diag_skip)

    out_itemsize = jnp.dtype(out_dtype).itemsize
    # VMEM footprint of one pipeline stage (double-buffered streamed inputs,
    # resident weights/shift, output block, accumulator, temp headroom).
    block_bytes = (
        2 * (tm * tm * 2 + tm * din * 2)       # A tile + H tile, x2 buffers
        + din * wcols * 2 + wcols * 4          # weights + shift (resident)
        + 2 * tm * dout * out_itemsize         # output block
        + tm * dout * 4                        # f32 accumulator scratch
        + 2 * tm * max(wcols, dout) * 4        # f32 temporaries (c, xw)
    )
    vmem_limit = min(max(8 * 1024 * 1024, int(1.5 * block_bytes)),
                     _physical_vmem_bytes() - 8 * 1024 * 1024)

    cost = pl.CostEstimate(
        flops=int(2 * n_pad * din * wcols * i_tiles + 2 * n_pad * n_pad * dout),
        transcendentals=0,
        bytes_accessed=int(a.size * a.dtype.itemsize
                           + h.size * h.dtype.itemsize * i_tiles
                           + w.size * w.dtype.itemsize
                           + sh.size * sh.dtype.itemsize
                           + n_pad * dout * out_itemsize),
    )

    grid_spec = pltpu.PrefetchScalarGridSpec(
        num_scalar_prefetch=0,
        grid=(i_tiles, k_tiles),
        in_specs=[
            pl.BlockSpec((tm, tm), lambda i, k: (i, k)),      # A_hat tile
            pl.BlockSpec((tm, din), lambda i, k: (k, 0)),     # H_prev K tile
            pl.BlockSpec((din, wcols), lambda i, k: (0, 0)),  # folded weights
            pl.BlockSpec((1, dout), lambda i, k: (0, 0)),     # folded shift
        ],
        out_specs=pl.BlockSpec((tm, dout), lambda i, k: (i, 0)),
        scratch_shapes=[pltpu.VMEM((tm, dout), jnp.float32)],
    )

    return pl.pallas_call(
        kernel,
        out_shape=jax.ShapeDtypeStruct((n_pad, dout), out_dtype),
        grid_spec=grid_spec,
        compiler_params=pltpu.CompilerParams(
            dimension_semantics=("parallel", "arbitrary"),
            vmem_limit_bytes=int(vmem_limit)),
        cost_estimate=cost,
    )(a, h, w, sh)


# ----------------------------------------------------------------------------
# JAX glue: adjacency normalization, parameter folding, padding, 3 layer calls.
# ----------------------------------------------------------------------------
def _round_up(n, m):
    return ((n + m - 1) // m) * m


def _pad2(w, rows, cols):
    return jnp.pad(w, ((0, rows - w.shape[0]), (0, cols - w.shape[1])))


def _pad1(v, cols):
    return jnp.pad(v, (0, cols - v.shape[0]))


def _bn_fold(gamma, beta, running_mean, running_var, eps=1e-5):
    """Per-feature (scale, shift) so that bn(x) = x*scale + shift (eval mode)."""
    inv_std = 1.0 / jnp.sqrt(running_var + eps)
    scale = gamma * inv_std
    shift = beta - running_mean * scale
    return scale, shift


def _dense_gcn_adjacency(edge_index, num_nodes):
    """PyG-consistent gcn_norm, densified: A_hat = D^-1/2 (A + I) D^-1/2."""
    src, dst = edge_index[0], edge_index[1]
    w = jnp.where(src == dst, 0.0, 1.0).astype(jnp.float32)
    adj = jnp.zeros((num_nodes, num_nodes), jnp.float32).at[dst, src].add(w)
    adj = adj + jnp.eye(num_nodes, dtype=jnp.float32)  # fresh self loops
    deg = jnp.sum(adj, axis=1)                          # degree at target
    d_inv_sqrt = jnp.where(deg > 0, jax.lax.rsqrt(deg), 0.0)
    return d_inv_sqrt[:, None] * adj * d_inv_sqrt[None, :]


@functools.partial(jax.jit, static_argnames=("num_nodes",))
def graph_encoder_forward(x, edge_index, params, num_nodes):
    f32, bf16 = jnp.float32, jnp.bfloat16

    n, f = x.shape
    hdim2 = params["w1"].shape[1]
    hdim = params["w3"].shape[1]

    fp = _round_up(f, LANE)
    h2p = _round_up(hdim2, LANE)
    hp = _round_up(hdim, LANE)

    # Row/K tile size and padded node count (tm == tk by construction).
    if n <= 256:
        n_pad = _round_up(n, 8)
        tm = n_pad
    else:
        tm = 256
        n_pad = _round_up(n, tm)

    a_hat = _dense_gcn_adjacency(edge_index, num_nodes)
    a_p = _pad2(a_hat, n_pad, n_pad).astype(bf16)
    x_p = _pad2(x, n_pad, fp).astype(bf16)

    # Fold conv bias + BN affine into the weights / a single shift per layer.
    s1, t1 = _bn_fold(*params["bn1"])
    s2, t2 = _bn_fold(*params["bn2"])
    s3, t3 = _bn_fold(*params["bn3"])

    w1f = params["w1"] * s1[None, :]
    sh1 = params["b1"] * s1 + t1
    w2f = params["w2"] * s2[None, :]
    sh2 = params["b2"] * s2 + t2 + params["br"]   # residual bias folded in too
    w3f = params["w3"] * s3[None, :]
    sh3 = params["b3"] * s3 + t3

    # Zero-pad to lane-aligned shapes; padded columns stay exactly 0 end-to-end.
    w1p = _pad2(w1f, fp, h2p).astype(bf16)
    w2rp = jnp.concatenate(
        [_pad2(w2f, h2p, hp), _pad2(params["wr"], h2p, hp)], axis=1
    ).astype(bf16)                                # (H2p, 2*Hp)
    w3p = _pad2(w3f, hp, hp).astype(bf16)

    sh1p = _pad1(sh1, h2p)[None, :].astype(f32)
    sh2p = _pad1(sh2, hp)[None, :].astype(f32)
    sh3p = _pad1(sh3, hp)[None, :].astype(f32)

    # Layer 1: relu(A @ (X W1') + sh1)
    h1 = _gcn_layer_call(a_p, x_p, w1p, sh1p, dout=h2p, tm=tm)
    # Layer 2: relu(A @ (h1 W2') + h1 Wr + sh2)   (residual via diagonal tile)
    h2 = _gcn_layer_call(a_p, h1, w2rp, sh2p, dout=hp, tm=tm,
                         add_diag_residual=True)
    # Layer 3: relu(A @ (h2 W3') + h2 + sh3)      (skip via diagonal tile)
    h3 = _gcn_layer_call(a_p, h2, w3p, sh3p, dout=hp, tm=tm,
                         add_diag_skip=True)

    return h3[:n, :hdim].astype(f32)               # drop padding, back to f32


# ----------------------------------------------------------------------------
# Pure-JAX reference (eval-mode PyTorch semantics) for correctness checking.
# ----------------------------------------------------------------------------
def _reference_forward(x, edge_index, params, num_nodes):
    a = _dense_gcn_adjacency(edge_index, num_nodes)

    def bn(hx, p, eps=1e-5):
        g, b, m, v = p
        return (hx - m) / jnp.sqrt(v + eps) * g + b

    h1 = jax.nn.relu(bn(a @ (x @ params["w1"]) + params["b1"], params["bn1"]))
    h2 = bn(a @ (h1 @ params["w2"]) + params["b2"], params["bn2"])
    h2 = jax.nn.relu(h2 + h1 @ params["wr"] + params["br"])
    h3 = bn(a @ (h2 @ params["w3"]) + params["b3"], params["bn3"])
    return jax.nn.relu(h3 + h2)


# ----------------------------------------------------------------------------
# Deterministic parameter construction (synthetic weights, no checkpoint).
# ----------------------------------------------------------------------------
def make_params(key, num_features, hidden_dim):
    h2 = hidden_dim * 2
    ks = jax.random.split(key, 8)

    def glorot(k, shape):
        lim = jnp.sqrt(6.0 / (shape[0] + shape[1]))
        return jax.random.uniform(k, shape, jnp.float32, -lim, lim)

    def bn_params(k, dim):
        gamma = 1.0 + 0.05 * jax.random.normal(k, (dim,), jnp.float32)
        beta = 0.02 * jnp.arange(dim, dtype=jnp.float32)
        running_mean = 0.01 * jnp.arange(dim, dtype=jnp.float32)
        running_var = jnp.ones((dim,), jnp.float32)
        return (gamma, beta, running_mean, running_var)

    return {
        "w1": glorot(ks[0], (num_features, h2)),
        "b1": jnp.zeros((h2,), jnp.float32),
        "w2": glorot(ks[1], (h2, hidden_dim)),
        "b2": jnp.zeros((hidden_dim,), jnp.float32),
        "w3": glorot(ks[2], (hidden_dim, hidden_dim)),
        "b3": jnp.zeros((hidden_dim,), jnp.float32),
        "wr": glorot(ks[3], (h2, hidden_dim)),
        "br": 0.01 * jnp.ones((hidden_dim,), jnp.float32),
        "bn1": bn_params(ks[4], h2),
        "bn2": bn_params(ks[5], hidden_dim),
        "bn3": bn_params(ks[6], hidden_dim),
    }


if __name__ == "__main__":
    NUM_NODES = 16
    NUM_FEATURES = 8
    HIDDEN_DIM = 16

    key = jax.random.PRNGKey(0)
    k_x, k_p = jax.random.split(key)

    # node features (N, F)
    x = jax.random.normal(k_x, (NUM_NODES, NUM_FEATURES), jnp.float32)

    # simple deterministic bidirectional ring graph: edge_index (2, E)
    src = jnp.arange(NUM_NODES, dtype=jnp.int32)
    dst = (src + 1) % NUM_NODES
    edge_index = jnp.stack(
        [jnp.concatenate([src, dst]), jnp.concatenate([dst, src])], axis=0
    )

    params = make_params(k_p, NUM_FEATURES, HIDDEN_DIM)

    out = graph_encoder_forward(x, edge_index, params, NUM_NODES)
    jax.block_until_ready(out)

    ref = _reference_forward(x, edge_index, params, NUM_NODES)

    assert out.shape == (NUM_NODES, HIDDEN_DIM)
    assert bool(jnp.all(out >= 0.0))                         # final ReLU
    # NOTE: tolerance is bf16-matmul/bf16-activation bounded by design.
    assert bool(jnp.allclose(out, ref, atol=0.1, rtol=0.1))
    print("KERNEL_OK")
</pallas_src>

<mosaic_0001>
module attributes {stable_mosaic.version = 11 : i64} {
  func.func @_gcn_layer_kernel(%arg0: i32, %arg1: i32, %arg2: memref<16x16xbf16, #tpu.memory_space<vmem>>, %arg3: memref<16x128xbf16, #tpu.memory_space<vmem>>, %arg4: memref<128x128xbf16, #tpu.memory_space<vmem>>, %arg5: memref<1x128xf32, #tpu.memory_space<vmem>>, %arg6: memref<16x128xbf16, #tpu.memory_space<vmem>>, %arg7: memref<16x128xf32, #tpu.memory_space<vmem>>) attributes {dimension_semantics = [#tpu.dimension_semantics<parallel>, #tpu.dimension_semantics<arbitrary>], iteration_bounds = array<i64: 1, 1>, scalar_prefetch = 0 : i64, scratch_operands = 1 : i64, tpu.core_type = #tpu.core_type<tc>, window_params = [{transform_indices = @transform_0, window_bounds = array<i64: 16, 16>}, {transform_indices = @transform_1, window_bounds = array<i64: 16, 128>}, {pipeline_mode = #tpu.pipeline_mode<synchronous>, transform_indices = @transform_2, window_bounds = array<i64: 128, 128>}, {pipeline_mode = #tpu.pipeline_mode<synchronous>, transform_indices = @transform_3, window_bounds = array<i64: 1, 128>}, {transform_indices = @transform_4, window_bounds = array<i64: 16, 128>}]} {
    %c0_i32 = arith.constant 0 : i32
    %0 = arith.cmpi eq, %arg1, %c0_i32 : i32
    %1 = arith.extui %0 : i1 to i32
    %c0_i32_0 = arith.constant 0 : i32
    %2 = arith.cmpi ne, %1, %c0_i32_0 : i32
    scf.if %2 {
      %cst_13 = arith.constant 0.000000e+00 : f32
      %15 = vector.broadcast %cst_13 : f32 to vector<16x128xf32>
      %c0_14 = arith.constant 0 : index
      %c0_15 = arith.constant 0 : index
      %16 = vector.load %arg7[%c0_14, %c0_15] : memref<16x128xf32, #tpu.memory_space<vmem>>, vector<16x128xf32>
      tpu.vector_store %arg7[%c0_14, %c0_15], %15 {strides = array<i32>} : memref<16x128xf32, #tpu.memory_space<vmem>>, vector<16x128xf32>,
    } else {
    }
    %c0 = arith.constant 0 : index
    %c0_1 = arith.constant 0 : index
    %3 = vector.load %arg3[%c0, %c0_1] : memref<16x128xbf16, #tpu.memory_space<vmem>>, vector<16x128xbf16>
    %c0_2 = arith.constant 0 : index
    %c0_3 = arith.constant 0 : index
    %4 = vector.load %arg4[%c0_2, %c0_3] : memref<128x128xbf16, #tpu.memory_space<vmem>>, vector<128x128xbf16>
    %cst = arith.constant dense<0.000000e+00> : vector<16x128xf32>
    %5 = tpu.matmul %3, %4, %cst {dimension_numbers = #tpu.dot_dimension_numbers<[1], [0], [0], [1], [0, 0, 1, 1], [], []>} : vector<16x128xbf16>, vector<128x128xbf16>, vector<16x128xf32> -> vector<16x128xf32>
    %c0_4 = arith.constant 0 : index
    %c0_5 = arith.constant 0 : index
    %6 = vector.load %arg7[%c0_4, %c0_5] : memref<16x128xf32, #tpu.memory_space<vmem>>, vector<16x128xf32>
    %c0_6 = arith.constant 0 : index
    %c0_7 = arith.constant 0 : index
    %7 = vector.load %arg2[%c0_6, %c0_7] : memref<16x16xbf16, #tpu.memory_space<vmem>>, vector<16x16xbf16>
    %8 = arith.truncf %5 : vector<16x128xf32> to vector<16x128xbf16>
    %cst_8 = arith.constant dense<0.000000e+00> : vector<16x128xf32>
    %9 = tpu.matmul %7, %8, %cst_8 {dimension_numbers = #tpu.dot_dimension_numbers<[1], [0], [0], [1], [0, 0, 1, 1], [], []>} : vector<16x16xbf16>, vector<16x128xbf16>, vector<16x128xf32> -> vector<16x128xf32>
    %10 = arith.addf %6, %9 : vector<16x128xf32>
    %c0_9 = arith.constant 0 : index
    %c0_10 = arith.constant 0 : index
    %11 = vector.load %arg7[%c0_9, %c0_10] : memref<16x128xf32, #tpu.memory_space<vmem>>, vector<16x128xf32>
    tpu.vector_store %arg7[%c0_9, %c0_10], %10 {strides = array<i32>} : memref<16x128xf32, #tpu.memory_space<vmem>>, vector<16x128xf32>,
    %c0_i32_11 = arith.constant 0 : i32
    %12 = arith.cmpi eq, %arg1, %c0_i32_11 : i32
    %13 = arith.extui %12 : i1 to i32
    %c0_i32_12 = arith.constant 0 : i32
    %14 = arith.cmpi ne, %13, %c0_i32_12 : i32
    scf.if %14 {
      %c0_13 = arith.constant 0 : index
      %c0_14 = arith.constant 0 : index
      %15 = vector.load %arg7[%c0_13, %c0_14] : memref<16x128xf32, #tpu.memory_space<vmem>>, vector<16x128xf32>
      %c0_15 = arith.constant 0 : index
      %c0_16 = arith.constant 0 : index
      %16 = vector.load %arg5[%c0_15, %c0_16] : memref<1x128xf32, #tpu.memory_space<vmem>>, vector<1x128xf32>
      %17 = vector.broadcast %16 : vector<1x128xf32> to vector<16x128xf32>
      %18 = arith.addf %15, %17 : vector<16x128xf32>
      %cst_17 = arith.constant 0.000000e+00 : f32
      %19 = vector.broadcast %cst_17 : f32 to vector<16x128xf32>
      %20 = arith.maximumf %18, %19 : vector<16x128xf32>
      %21 = arith.truncf %20 : vector<16x128xf32> to vector<16x128xbf16>
      %c0_18 = arith.constant 0 : index
      %c0_19 = arith.constant 0 : index
      %22 = vector.load %arg6[%c0_18, %c0_19] : memref<16x128xbf16, #tpu.memory_space<vmem>>, vector<16x128xbf16>
      tpu.vector_store %arg6[%c0_18, %c0_19], %21 {strides = array<i32>} : memref<16x128xbf16, #tpu.memory_space<vmem>>, vector<16x128xbf16>,
    } else {
    }
    return
  }
  func.func @transform_0(%arg0: i32, %arg1: i32) -> (i32, i32) {
    %c0_i32 = arith.constant 0 : i32
    return %arg0, %arg1 : i32, i32
  }
  func.func @transform_1(%arg0: i32, %arg1: i32) -> (i32, i32) {
    %c0_i32 = arith.constant 0 : i32
    %c0_i32_0 = arith.constant 0 : i32
    return %arg1, %c0_i32 : i32, i32
  }
  func.func @transform_2(%arg0: i32, %arg1: i32) -> (i32, i32) {
    %c0_i32 = arith.constant 0 : i32
    %c0_i32_0 = arith.constant 0 : i32
    %c0_i32_1 = arith.constant 0 : i32
    return %c0_i32, %c0_i32_0 : i32, i32
  }
  func.func @transform_3(%arg0: i32, %arg1: i32) -> (i32, i32) {
    %c0_i32 = arith.constant 0 : i32
    %c0_i32_0 = arith.constant 0 : i32
    %c0_i32_1 = arith.constant 0 : i32
    return %c0_i32, %c0_i32_0 : i32, i32
  }
  func.func @transform_4(%arg0: i32, %arg1: i32) -> (i32, i32) {
    %c0_i32 = arith.constant 0 : i32
    %c0_i32_0 = arith.constant 0 : i32
    return %arg0, %c0_i32 : i32, i32
  }
}

module attributes {stable_mosaic.version = 11 : i64} {
  func.func @_gcn_layer_kernel(%arg0: i32, %arg1: i32, %arg2: memref<16x16xbf16, #tpu.memory_space<vmem>>, %arg3: memref<16x128xbf16, #tpu.memory_space<vmem>>, %arg4: memref<128x256xbf16, #tpu.memory_space<vmem>>, %arg5: memref<1x128xf32, #tpu.memory_space<vmem>>, %arg6: memref<16x128xbf16, #tpu.memory_space<vmem>>, %arg7: memref<16x128xf32, #tpu.memory_space<vmem>>) attributes {dimension_semantics = [#tpu.dimension_semantics<parallel>, #tpu.dimension_semantics<arbitrary>], iteration_bounds = array<i64: 1, 1>, scalar_prefetch = 0 : i64, scratch_operands = 1 : i64, tpu.core_type = #tpu.core_type<tc>, window_params = [{transform_indices = @transform_0, window_bounds = array<i64: 16, 16>}, {transform_indices = @transform_1, window_bounds = array<i64: 16, 128>}, {pipeline_mode = #tpu.pipeline_mode<synchronous>, transform_indices = @transform_2, window_bounds = array<i64: 128, 256>}, {pipeline_mode = #tpu.pipeline_mode<synchronous>, transform_indices = @transform_3, window_bounds = array<i64: 1, 128>}, {transform_indices = @transform_4, window_bounds = array<i64: 16, 128>}]} {
    %c0_i32 = arith.constant 0 : i32
    %0 = arith.cmpi eq, %arg1, %c0_i32 : i32
    %1 = arith.extui %0 : i1 to i32
    %c0_i32_0 = arith.constant 0 : i32
    %2 = arith.cmpi ne, %1, %c0_i32_0 : i32
    scf.if %2 {
      %cst_14 = arith.constant 0.000000e+00 : f32
      %19 = vector.broadcast %cst_14 : f32 to vector<16x128xf32>
      %c0_15 = arith.constant 0 : index
      %c0_16 = arith.constant 0 : index
      %20 = vector.load %arg7[%c0_15, %c0_16] : memref<16x128xf32, #tpu.memory_space<vmem>>, vector<16x128xf32>
      tpu.vector_store %arg7[%c0_15, %c0_16], %19 {strides = array<i32>} : memref<16x128xf32, #tpu.memory_space<vmem>>, vector<16x128xf32>,
    } else {
    }
    %c0 = arith.constant 0 : index
    %c0_1 = arith.constant 0 : index
    %3 = vector.load %arg3[%c0, %c0_1] : memref<16x128xbf16, #tpu.memory_space<vmem>>, vector<16x128xbf16>
    %c0_2 = arith.constant 0 : index
    %c0_3 = arith.constant 0 : index
    %4 = vector.load %arg4[%c0_2, %c0_3] : memref<128x256xbf16, #tpu.memory_space<vmem>>, vector<128x256xbf16>
    %cst = arith.constant dense<0.000000e+00> : vector<16x256xf32>
    %5 = tpu.matmul %3, %4, %cst {dimension_numbers = #tpu.dot_dimension_numbers<[1], [0], [0], [1], [0, 0, 1, 1], [], []>} : vector<16x128xbf16>, vector<128x256xbf16>, vector<16x256xf32> -> vector<16x256xf32>
    %c0_4 = arith.constant 0 : index
    %c0_5 = arith.constant 0 : index
    %6 = vector.load %arg7[%c0_4, %c0_5] : memref<16x128xf32, #tpu.memory_space<vmem>>, vector<16x128xf32>
    %c0_6 = arith.constant 0 : index
    %c0_7 = arith.constant 0 : index
    %7 = vector.load %arg2[%c0_6, %c0_7] : memref<16x16xbf16, #tpu.memory_space<vmem>>, vector<16x16xbf16>
    %8 = vector.extract_strided_slice %5 {offsets = [0, 0], sizes = [16, 128], strides = [1, 1]} : vector<16x256xf32> to vector<16x128xf32>
    %9 = arith.truncf %8 : vector<16x128xf32> to vector<16x128xbf16>
    %cst_8 = arith.constant dense<0.000000e+00> : vector<16x128xf32>
    %10 = tpu.matmul %7, %9, %cst_8 {dimension_numbers = #tpu.dot_dimension_numbers<[1], [0], [0], [1], [0, 0, 1, 1], [], []>} : vector<16x16xbf16>, vector<16x128xbf16>, vector<16x128xf32> -> vector<16x128xf32>
    %11 = arith.addf %6, %10 : vector<16x128xf32>
    %c0_9 = arith.constant 0 : index
    %c0_10 = arith.constant 0 : index
    %12 = vector.load %arg7[%c0_9, %c0_10] : memref<16x128xf32, #tpu.memory_space<vmem>>, vector<16x128xf32>
    tpu.vector_store %arg7[%c0_9, %c0_10], %11 {strides = array<i32>} : memref<16x128xf32, #tpu.memory_space<vmem>>, vector<16x128xf32>,
    %13 = arith.cmpi eq, %arg1, %arg0 : i32
    %14 = arith.extui %13 : i1 to i32
    %c0_i32_11 = arith.constant 0 : i32
    %15 = arith.cmpi ne, %14, %c0_i32_11 : i32
    scf.if %15 {
      %c0_14 = arith.constant 0 : index
      %c0_15 = arith.constant 0 : index
      %19 = vector.load %arg7[%c0_14, %c0_15] : memref<16x128xf32, #tpu.memory_space<vmem>>, vector<16x128xf32>
      %20 = vector.extract_strided_slice %5 {offsets = [0, 128], sizes = [16, 128], strides = [1, 1]} : vector<16x256xf32> to vector<16x128xf32>
      %21 = arith.addf %19, %20 : vector<16x128xf32>
      %c0_16 = arith.constant 0 : index
      %c0_17 = arith.constant 0 : index
      %22 = vector.load %arg7[%c0_16, %c0_17] : memref<16x128xf32, #tpu.memory_space<vmem>>, vector<16x128xf32>
      tpu.vector_store %arg7[%c0_16, %c0_17], %21 {strides = array<i32>} : memref<16x128xf32, #tpu.memory_space<vmem>>, vector<16x128xf32>,
    } else {
    }
    %c0_i32_12 = arith.constant 0 : i32
    %16 = arith.cmpi eq, %arg1, %c0_i32_12 : i32
    %17 = arith.extui %16 : i1 to i32
    %c0_i32_13 = arith.constant 0 : i32
    %18 = arith.cmpi ne, %17, %c0_i32_13 : i32
    scf.if %18 {
      %c0_14 = arith.constant 0 : index
      %c0_15 = arith.constant 0 : index
      %19 = vector.load %arg7[%c0_14, %c0_15] : memref<16x128xf32, #tpu.memory_space<vmem>>, vector<16x128xf32>
      %c0_16 = arith.constant 0 : index
      %c0_17 = arith.constant 0 : index
      %20 = vector.load %arg5[%c0_16, %c0_17] : memref<1x128xf32, #tpu.memory_space<vmem>>, vector<1x128xf32>
      %21 = vector.broadcast %20 : vector<1x128xf32> to vector<16x128xf32>
      %22 = arith.addf %19, %21 : vector<16x128xf32>
      %cst_18 = arith.constant 0.000000e+00 : f32
      %23 = vector.broadcast %cst_18 : f32 to vector<16x128xf32>
      %24 = arith.maximumf %22, %23 : vector<16x128xf32>
      %25 = arith.truncf %24 : vector<16x128xf32> to vector<16x128xbf16>
      %c0_19 = arith.constant 0 : index
      %c0_20 = arith.constant 0 : index
      %26 = vector.load %arg6[%c0_19, %c0_20] : memref<16x128xbf16, #tpu.memory_space<vmem>>, vector<16x128xbf16>
      tpu.vector_store %arg6[%c0_19, %c0_20], %25 {strides = array<i32>} : memref<16x128xbf16, #tpu.memory_space<vmem>>, vector<16x128xbf16>,
    } else {
    }
    return
  }
  func.func @transform_0(%arg0: i32, %arg1: i32) -> (i32, i32) {
    %c0_i32 = arith.constant 0 : i32
    return %arg0, %arg1 : i32, i32
  }
  func.func @transform_1(%arg0: i32, %arg1: i32) -> (i32, i32) {
    %c0_i32 = arith.constant 0 : i32
    %c0_i32_0 = arith.constant 0 : i32
    return %arg1, %c0_i32 : i32, i32
  }
  func.func @transform_2(%arg0: i32, %arg1: i32) -> (i32, i32) {
    %c0_i32 = arith.constant 0 : i32
    %c0_i32_0 = arith.constant 0 : i32
    %c0_i32_1 = arith.constant 0 : i32
    return %c0_i32, %c0_i32_0 : i32, i32
  }
  func.func @transform_3(%arg0: i32, %arg1: i32) -> (i32, i32) {
    %c0_i32 = arith.constant 0 : i32
    %c0_i32_0 = arith.constant 0 : i32
    %c0_i32_1 = arith.constant 0 : i32
    return %c0_i32, %c0_i32_0 : i32, i32
  }
  func.func @transform_4(%arg0: i32, %arg1: i32) -> (i32, i32) {
    %c0_i32 = arith.constant 0 : i32
    %c0_i32_0 = arith.constant 0 : i32
    return %arg0, %c0_i32 : i32, i32
  }
}

module attributes {stable_mosaic.version = 11 : i64} {
  func.func @_gcn_layer_kernel(%arg0: i32, %arg1: i32, %arg2: memref<16x16xbf16, #tpu.memory_space<vmem>>, %arg3: memref<16x128xbf16, #tpu.memory_space<vmem>>, %arg4: memref<128x128xbf16, #tpu.memory_space<vmem>>, %arg5: memref<1x128xf32, #tpu.memory_space<vmem>>, %arg6: memref<16x128xbf16, #tpu.memory_space<vmem>>, %arg7: memref<16x128xf32, #tpu.memory_space<vmem>>) attributes {dimension_semantics = [#tpu.dimension_semantics<parallel>, #tpu.dimension_semantics<arbitrary>], iteration_bounds = array<i64: 1, 1>, scalar_prefetch = 0 : i64, scratch_operands = 1 : i64, tpu.core_type = #tpu.core_type<tc>, window_params = [{transform_indices = @transform_0, window_bounds = array<i64: 16, 16>}, {transform_indices = @transform_1, window_bounds = array<i64: 16, 128>}, {pipeline_mode = #tpu.pipeline_mode<synchronous>, transform_indices = @transform_2, window_bounds = array<i64: 128, 128>}, {pipeline_mode = #tpu.pipeline_mode<synchronous>, transform_indices = @transform_3, window_bounds = array<i64: 1, 128>}, {transform_indices = @transform_4, window_bounds = array<i64: 16, 128>}]} {
    %c0_i32 = arith.constant 0 : i32
    %0 = arith.cmpi eq, %arg1, %c0_i32 : i32
    %1 = arith.extui %0 : i1 to i32
    %c0_i32_0 = arith.constant 0 : i32
    %2 = arith.cmpi ne, %1, %c0_i32_0 : i32
    scf.if %2 {
      %cst_14 = arith.constant 0.000000e+00 : f32
      %18 = vector.broadcast %cst_14 : f32 to vector<16x128xf32>
      %c0_15 = arith.constant 0 : index
      %c0_16 = arith.constant 0 : index
      %19 = vector.load %arg7[%c0_15, %c0_16] : memref<16x128xf32, #tpu.memory_space<vmem>>, vector<16x128xf32>
      tpu.vector_store %arg7[%c0_15, %c0_16], %18 {strides = array<i32>} : memref<16x128xf32, #tpu.memory_space<vmem>>, vector<16x128xf32>,
    } else {
    }
    %c0 = arith.constant 0 : index
    %c0_1 = arith.constant 0 : index
    %3 = vector.load %arg3[%c0, %c0_1] : memref<16x128xbf16, #tpu.memory_space<vmem>>, vector<16x128xbf16>
    %c0_2 = arith.constant 0 : index
    %c0_3 = arith.constant 0 : index
    %4 = vector.load %arg4[%c0_2, %c0_3] : memref<128x128xbf16, #tpu.memory_space<vmem>>, vector<128x128xbf16>
    %cst = arith.constant dense<0.000000e+00> : vector<16x128xf32>
    %5 = tpu.matmul %3, %4, %cst {dimension_numbers = #tpu.dot_dimension_numbers<[1], [0], [0], [1], [0, 0, 1, 1], [], []>} : vector<16x128xbf16>, vector<128x128xbf16>, vector<16x128xf32> -> vector<16x128xf32>
    %c0_4 = arith.constant 0 : index
    %c0_5 = arith.constant 0 : index
    %6 = vector.load %arg7[%c0_4, %c0_5] : memref<16x128xf32, #tpu.memory_space<vmem>>, vector<16x128xf32>
    %c0_6 = arith.constant 0 : index
    %c0_7 = arith.constant 0 : index
    %7 = vector.load %arg2[%c0_6, %c0_7] : memref<16x16xbf16, #tpu.memory_space<vmem>>, vector<16x16xbf16>
    %8 = arith.truncf %5 : vector<16x128xf32> to vector<16x128xbf16>
    %cst_8 = arith.constant dense<0.000000e+00> : vector<16x128xf32>
    %9 = tpu.matmul %7, %8, %cst_8 {dimension_numbers = #tpu.dot_dimension_numbers<[1], [0], [0], [1], [0, 0, 1, 1], [], []>} : vector<16x16xbf16>, vector<16x128xbf16>, vector<16x128xf32> -> vector<16x128xf32>
    %10 = arith.addf %6, %9 : vector<16x128xf32>
    %c0_9 = arith.constant 0 : index
    %c0_10 = arith.constant 0 : index
    %11 = vector.load %arg7[%c0_9, %c0_10] : memref<16x128xf32, #tpu.memory_space<vmem>>, vector<16x128xf32>
    tpu.vector_store %arg7[%c0_9, %c0_10], %10 {strides = array<i32>} : memref<16x128xf32, #tpu.memory_space<vmem>>, vector<16x128xf32>,
    %12 = arith.cmpi eq, %arg1, %arg0 : i32
    %13 = arith.extui %12 : i1 to i32
    %c0_i32_11 = arith.constant 0 : i32
    %14 = arith.cmpi ne, %13, %c0_i32_11 : i32
    scf.if %14 {
      %c0_14 = arith.constant 0 : index
      %c0_15 = arith.constant 0 : index
      %18 = vector.load %arg7[%c0_14, %c0_15] : memref<16x128xf32, #tpu.memory_space<vmem>>, vector<16x128xf32>
      %c0_16 = arith.constant 0 : index
      %c0_17 = arith.constant 0 : index
      %19 = vector.load %arg3[%c0_16, %c0_17] : memref<16x128xbf16, #tpu.memory_space<vmem>>, vector<16x128xbf16>
      %20 = arith.extf %19 : vector<16x128xbf16> to vector<16x128xf32>
      %21 = arith.addf %18, %20 : vector<16x128xf32>
      %c0_18 = arith.constant 0 : index
      %c0_19 = arith.constant 0 : index
      %22 = vector.load %arg7[%c0_18, %c0_19] : memref<16x128xf32, #tpu.memory_space<vmem>>, vector<16x128xf32>
      tpu.vector_store %arg7[%c0_18, %c0_19], %21 {strides = array<i32>} : memref<16x128xf32, #tpu.memory_space<vmem>>, vector<16x128xf32>,
    } else {
    }
    %c0_i32_12 = arith.constant 0 : i32
    %15 = arith.cmpi eq, %arg1, %c0_i32_12 : i32
    %16 = arith.extui %15 : i1 to i32
    %c0_i32_13 = arith.constant 0 : i32
    %17 = arith.cmpi ne, %16, %c0_i32_13 : i32
    scf.if %17 {
      %c0_14 = arith.constant 0 : index
      %c0_15 = arith.constant 0 : index
      %18 = vector.load %arg7[%c0_14, %c0_15] : memref<16x128xf32, #tpu.memory_space<vmem>>, vector<16x128xf32>
      %c0_16 = arith.constant 0 : index
      %c0_17 = arith.constant 0 : index
      %19 = vector.load %arg5[%c0_16, %c0_17] : memref<1x128xf32, #tpu.memory_space<vmem>>, vector<1x128xf32>
      %20 = vector.broadcast %19 : vector<1x128xf32> to vector<16x128xf32>
      %21 = arith.addf %18, %20 : vector<16x128xf32>
      %cst_18 = arith.constant 0.000000e+00 : f32
      %22 = vector.broadcast %cst_18 : f32 to vector<16x128xf32>
      %23 = arith.maximumf %21, %22 : vector<16x128xf32>
      %24 = arith.truncf %23 : vector<16x128xf32> to vector<16x128xbf16>
      %c0_19 = arith.constant 0 : index
      %c0_20 = arith.constant 0 : index
      %25 = vector.load %arg6[%c0_19, %c0_20] : memref<16x128xbf16, #tpu.memory_space<vmem>>, vector<16x128xbf16>
      tpu.vector_store %arg6[%c0_19, %c0_20], %24 {strides = array<i32>} : memref<16x128xbf16, #tpu.memory_space<vmem>>, vector<16x128xbf16>,
    } else {
    }
    return
  }
  func.func @transform_0(%arg0: i32, %arg1: i32) -> (i32, i32) {
    %c0_i32 = arith.constant 0 : i32
    return %arg0, %arg1 : i32, i32
  }
  func.func @transform_1(%arg0: i32, %arg1: i32) -> (i32, i32) {
    %c0_i32 = arith.constant 0 : i32
    %c0_i32_0 = arith.constant 0 : i32
    return %arg1, %c0_i32 : i32, i32
  }
  func.func @transform_2(%arg0: i32, %arg1: i32) -> (i32, i32) {
    %c0_i32 = arith.constant 0 : i32
    %c0_i32_0 = arith.constant 0 : i32
    %c0_i32_1 = arith.constant 0 : i32
    return %c0_i32, %c0_i32_0 : i32, i32
  }
  func.func @transform_3(%arg0: i32, %arg1: i32) -> (i32, i32) {
    %c0_i32 = arith.constant 0 : i32
    %c0_i32_0 = arith.constant 0 : i32
    %c0_i32_1 = arith.constant 0 : i32
    return %c0_i32, %c0_i32_0 : i32, i32
  }
  func.func @transform_4(%arg0: i32, %arg1: i32) -> (i32, i32) {
    %c0_i32 = arith.constant 0 : i32
    %c0_i32_0 = arith.constant 0 : i32
    return %arg0, %c0_i32 : i32, i32
  }
}

</mosaic_0001>

<llo_original>
// kernel: graph_encoder_forward.4
$region0: #{graph_encoder_forward.4}
  #allocation0 [shape = 'u32[]', space=smem, size = 0x4, offset = 0x4, fixed_abs, tag = 'smem constant byte address 0x4 - core index']
  #allocation1 [shape = 'u32[72,128]{1,0:T(1,128)}', space=vmem, size = 0x9000, scoped, tag = 'internal scratch']
  #allocation2 [shape = 'f32[16,128]{1,0:T(8,128)}', space=vmem, size = 0x2000, scoped, tag = 'scratch operand']
  %s0 = inlined_call_operand.vmem [shape: bf16[16,16], index: 0, kind: input, shape index: {}]
  %s1 = inlined_call_operand.vmem [shape: bf16[16,128], index: 1, kind: input, shape index: {}]
  %s2 = inlined_call_operand.vmem [shape: bf16[128,256], index: 2, kind: input, shape index: {}]
  %s3 = inlined_call_operand.vmem [shape: f32[1,128], index: 3, kind: input, shape index: {}]
  %s4 = inlined_call_operand.vmem [shape: bf16[16,128], index: 4, kind: output, shape index: {}]
  %s5 = sld [smem:[#allocation0]]
  $region38: #{graph_encoder_forward.4} parent=0
    _
  %s7 = ssub.s32 1, %s5
  %s8 = scalar_select 0, %s7, %s5
  // Predicated region
  $region2: #{graph_encoder_forward.4} parent=0 // pred_check
    _
  $region3: #{graph_encoder_forward.4} parent=0 // pred_check_branch
    %10 = sbr.rel (0) target = $region5
  $region4: #{graph_encoder_forward.4} parent=0 // pred_region
    _
  $region5: #{graph_encoder_forward.4} parent=0 // pred_fallthru
    _
  // Predicated region
  $region6: #{graph_encoder_forward.4} parent=0 // pred_check
    _
  $region7: #{graph_encoder_forward.4} parent=0 // pred_check_branch
    %12 = sbr.rel (0) target = $region9
  $region8: #{graph_encoder_forward.4} parent=0 // pred_region
    _
  $region9: #{graph_encoder_forward.4} parent=0 // pred_fallthru
    _
  // Predicated region
  $region10: #{graph_encoder_forward.4} parent=0 // pred_check
    _
  $region11: #{graph_encoder_forward.4} parent=0 // pred_check_branch
    %14 = sbr.rel (0) target = $region13
  $region12: #{graph_encoder_forward.4} parent=0 // pred_region
    _
  $region13: #{graph_encoder_forward.4} parent=0 // pred_fallthru
    _
  // Predicated region
  $region14: #{graph_encoder_forward.4} parent=0 // pred_check
    _
  $region15: #{graph_encoder_forward.4} parent=0 // pred_check_branch
    %16 = sbr.rel (0) target = $region17
  $region16: #{graph_encoder_forward.4} parent=0 // pred_region
    _
  $region17: #{graph_encoder_forward.4} parent=0 // pred_fallthru
    _
  %p18 = scmp.eq.s32.totalorder 0, 0
  // Predicated region
  $region18: #{graph_encoder_forward.4} parent=0 // pred_check
    %p19 = pneg %p18
  $region19: #{graph_encoder_forward.4} parent=0 // pred_check_branch
    %21 = sbr.rel (%p19) target = $region21
  $region20: #{graph_encoder_forward.4} parent=0 // pred_region
    %22 = vst [vmem:[#allocation2] sm:$0xff] 0.0
    %23 = vst [vmem:[#allocation2 + $0x8] sm:$0xff] 0.0
  $region21: #{graph_encoder_forward.4} parent=0 // pred_fallthru
    _
  %v24 = vld [vmem:[%s1] sm:$0xf]
  %v25 = vld [vmem:[%s1 + $0x4] sm:$0xf]
  %v26 = vld [vmem:[%s2] sm:$0xff]
  %v27 = vld [vmem:[%s2 + $0x8] sm:$0xff]
  %v28 = vld [vmem:[%s2 + $0x10] sm:$0xff]
  %v29 = vld [vmem:[%s2 + $0x18] sm:$0xff]
  %v30 = vld [vmem:[%s2 + $0x20] sm:$0xff]
  %v31 = vld [vmem:[%s2 + $0x28] sm:$0xff]
  %v32 = vld [vmem:[%s2 + $0x30] sm:$0xff]
  %v33 = vld [vmem:[%s2 + $0x38] sm:$0xff]
  %v34 = vld [vmem:[%s2 + $0x40] sm:$0xff]
  %v35 = vld [vmem:[%s2 + $0x48] sm:$0xff]
  %v36 = vld [vmem:[%s2 + $0x50] sm:$0xff]
  %v37 = vld [vmem:[%s2 + $0x58] sm:$0xff]
  %v38 = vld [vmem:[%s2 + $0x60] sm:$0xff]
  %v39 = vld [vmem:[%s2 + $0x68] sm:$0xff]
  %v40 = vld [vmem:[%s2 + $0x70] sm:$0xff]
  %v41 = vld [vmem:[%s2 + $0x78] sm:$0xff]
  %v44 = vunpack.c.l.b16 %v24
  %v45 = vunpack.c.l.b16 %v25
  %v46 = vpack.c.b16 %v45, %v44
  %v64 = vunpack.c.l.b16 %v26
  %v65 = vunpack.c.h.b16 %v26
  %v66 = vunpack.c.l.b16 %v27
  %v67 = vunpack.c.h.b16 %v27
  %v68 = vunpack.c.l.b16 %v28
  %v69 = vunpack.c.h.b16 %v28
  %v70 = vunpack.c.l.b16 %v29
  %v71 = vunpack.c.h.b16 %v29
  %v72 = vunpack.c.l.b16 %v30
  %v73 = vunpack.c.h.b16 %v30
  %v74 = vunpack.c.l.b16 %v31
  %v75 = vunpack.c.h.b16 %v31
  %v76 = vunpack.c.l.b16 %v32
  %v77 = vunpack.c.h.b16 %v32
  %v78 = vunpack.c.l.b16 %v33
  %v79 = vunpack.c.h.b16 %v33
  %v80 = vunpack.c.l.b16 %v34
  %v81 = vunpack.c.h.b16 %v34
  %v82 = vunpack.c.l.b16 %v35
  %v83 = vunpack.c.h.b16 %v35
  %v84 = vunpack.c.l.b16 %v36
  %v85 = vunpack.c.h.b16 %v36
  %v86 = vunpack.c.l.b16 %v37
  %v87 = vunpack.c.h.b16 %v37
  %v88 = vunpack.c.l.b16 %v38
  %v89 = vunpack.c.h.b16 %v38
  %v90 = vunpack.c.l.b16 %v39
  %v91 = vunpack.c.h.b16 %v39
  %v92 = vunpack.c.l.b16 %v40
  %v93 = vunpack.c.h.b16 %v40
  %v94 = vunpack.c.l.b16 %v41
  %v95 = vunpack.c.h.b16 %v41
  %v96 = vpack.c.b16 %v66, %v64
  %v97 = vpack.c.b16 %v67, %v65
  %v98 = vpack.c.b16 %v70, %v68
  %v99 = vpack.c.b16 %v71, %v69
  %v100 = vpack.c.b16 %v74, %v72
  %v101 = vpack.c.b16 %v75, %v73
  %v102 = vpack.c.b16 %v78, %v76
  %v103 = vpack.c.b16 %v79, %v77
  %v104 = vpack.c.b16 %v82, %v80
  %v105 = vpack.c.b16 %v83, %v81
  %v106 = vpack.c.b16 %v86, %v84
  %v107 = vpack.c.b16 %v87, %v85
  %v108 = vpack.c.b16 %v90, %v88
  %v109 = vpack.c.b16 %v91, %v89
  %v110 = vpack.c.b16 %v94, %v92
  %v111 = vpack.c.b16 %v95, %v93
  %128 = vmatpush.bf16.msra.mxu0 %v110
  %129 = vmatpush.bf16.msra.mxu0 %v108
  %130 = vmatpush.bf16.msra.mxu0 %v106
  %131 = vmatpush.bf16.msra.mxu0 %v104
  %132 = vmatpush.bf16.msra.mxu0 %v102
  %133 = vmatpush.bf16.msra.mxu0 %v100
  %134 = vmatpush.bf16.msra.mxu0 %v98
  %135 = vmatpush.bf16.msra.mxu0 %v96
  %136 = vmatmul.bf16.gmra.mxu0 %v46
  %v137 = vpop.f32.mrf.mxu0
  %v138 = vadd.f32 0.0, %v137
  %v139 = vpop.f32.mrf.mxu0
  %v140 = vadd.f32 0.0, %v139
  %141 = vdwg.mxu0
  %142 = vmatpush.bf16.msra.mxu0 %v111
  %143 = vmatpush.bf16.msra.mxu0 %v109
  %144 = vmatpush.bf16.msra.mxu0 %v107
  %145 = vmatpush.bf16.msra.mxu0 %v105
  %146 = vmatpush.bf16.msra.mxu0 %v103
  %147 = vmatpush.bf16.msra.mxu0 %v101
  %148 = vmatpush.bf16.msra.mxu0 %v99
  %149 = vmatpush.bf16.msra.mxu0 %v97
  %150 = vmatmul.bf16.gmra.mxu0 %v46
  %v151 = vpop.f32.mrf.mxu0
  %v152 = vadd.f32 0.0, %v151
  %v153 = vpop.f32.mrf.mxu0
  %v154 = vadd.f32 0.0, %v153
  %155 = vdwg.mxu0
  %v156 = vld [vmem:[#allocation2] sm:$0xff]
  %v157 = vld [vmem:[#allocation2 + $0x8] sm:$0xff]
  %v158 = vld [vmem:[%s0] sm:$0xf]
  %v159 = vld [vmem:[%s0 + $0x4] sm:$0xf]
  %v160 = vpack.c.bf16 %v140, %v138
  %v163 = vunpack.c.l.b16 %v158
  %v164 = vunpack.c.l.b16 %v159
  %v165 = vpack.c.b16 %v164, %v163
  %vm166 = vcmask 130048
  %v168 = vsel %vm166, %v165, 0
  %170 = vmatpush.bf16.msra.mxu0 0
  %171 = vmatpush.bf16.msra.mxu0 0
  %172 = vmatpush.bf16.msra.mxu0 0
  %173 = vmatpush.bf16.msra.mxu0 0
  %174 = vmatpush.bf16.msra.mxu0 0
  %175 = vmatpush.bf16.msra.mxu0 0
  %176 = vmatpush.bf16.msra.mxu0 0
  %177 = vmatpush.bf16.msra.mxu0 %v160
  %178 = vmatmul.bf16.gmra.mxu0 %v168
  %v179 = vpop.f32.mrf.mxu0
  %v180 = vadd.f32 0.0, %v179
  %v181 = vpop.f32.mrf.mxu0
  %v182 = vadd.f32 0.0, %v181
  %183 = vdwg.mxu0
  %v184 = vadd.f32 %v156, %v180
  %v185 = vadd.f32 %v157, %v182
  %186 = vst [vmem:[#allocation2] sm:$0xff] %v184
  %187 = vst [vmem:[#allocation2 + $0x8] sm:$0xff] %v185
  %p188 = scmp.eq.s32.totalorder 0, 0
  // Predicated region
  $region22: #{graph_encoder_forward.4} parent=0 // pred_check
    %p189 = pneg %p188
  $region23: #{graph_encoder_forward.4} parent=0 // pred_check_branch
    %191 = sbr.rel (%p189) target = $region25
  $region24: #{graph_encoder_forward.4} parent=0 // pred_region
    %v192 = vld [vmem:[#allocation2] sm:$0xff]
    %v193 = vld [vmem:[#allocation2 + $0x8] sm:$0xff]
    %v194 = vadd.f32 %v192, %v152
    %v195 = vadd.f32 %v193, %v154
    %196 = vst [vmem:[#allocation2] sm:$0xff] %v194
    %197 = vst [vmem:[#allocation2 + $0x8] sm:$0xff] %v195
  $region25: #{graph_encoder_forward.4} parent=0 // pred_fallthru
    _
  // Predicated region
  $region26: #{graph_encoder_forward.4} parent=0 // pred_check
    %p198 = pneg %p18
  $region27: #{graph_encoder_forward.4} parent=0 // pred_check_branch
    %200 = sbr.rel (%p198) target = $region29
  $region28: #{graph_encoder_forward.4} parent=0 // pred_region
    %v201 = vld [vmem:[#allocation2] sm:$0xff]
    %v202 = vld [vmem:[#allocation2 + $0x8] sm:$0xff]
    %v203 = vld [vmem:[%s3] sm:$0x1]
    %v205 = vperm.slane %v203, 0
    %v207 = vadd.f32 %v201, %v205
    %v208 = vadd.f32 %v202, %v205
    %v209 = vmax.f32 %v207, 0.0
    %v210 = vmax.f32 %v208, 0.0
    %v211 = vpack.c.bf16 %v209, %v209
    %v212 = vpack.c.bf16 %v210, %v210
    %213 = vst [vmem:[%s4] sm:$0xf] %v211
    %214 = vst [vmem:[%s4 + $0x4] sm:$0xf] %v212
  $region29: #{graph_encoder_forward.4} parent=0 // pred_fallthru
    _
  // Predicated region
  $region30: #{graph_encoder_forward.4} parent=0 // pred_check
    _
  $region31: #{graph_encoder_forward.4} parent=0 // pred_check_branch
    %216 = sbr.rel (0) target = $region33
  $region32: #{graph_encoder_forward.4} parent=0 // pred_region
    _
  $region33: #{graph_encoder_forward.4} parent=0 // pred_fallthru
    _
  // Predicated region
  $region34: #{graph_encoder_forward.4} parent=0 // pred_check
    _
  $region35: #{graph_encoder_forward.4} parent=0 // pred_check_branch
    %218 = sbr.rel (0) target = $region37
  $region36: #{graph_encoder_forward.4} parent=0 // pred_region
    _
  $region37: #{graph_encoder_forward.4} parent=0 // pred_fallthru
    _

// kernel: graph_encoder_forward.3
$region0: #{graph_encoder_forward.3}
  #allocation0 [shape = 'u32[]', space=smem, size = 0x4, offset = 0x4, fixed_abs, tag = 'smem constant byte address 0x4 - core index']
  #allocation1 [shape = 'u32[72,128]{1,0:T(1,128)}', space=vmem, size = 0x9000, scoped, tag = 'internal scratch']
  #allocation2 [shape = 'f32[16,128]{1,0:T(8,128)}', space=vmem, size = 0x2000, scoped, tag = 'scratch operand']
  %s0 = inlined_call_operand.vmem [shape: bf16[16,16], index: 0, kind: input, shape index: {}]
  %s1 = inlined_call_operand.vmem [shape: bf16[16,128], index: 1, kind: input, shape index: {}]
  %s2 = inlined_call_operand.vmem [shape: bf16[128,128], index: 2, kind: input, shape index: {}]
  %s3 = inlined_call_operand.vmem [shape: f32[1,128], index: 3, kind: input, shape index: {}]
  %s4 = inlined_call_operand.vmem [shape: bf16[16,128], index: 4, kind: output, shape index: {}]
  %s5 = sld [smem:[#allocation0]]
  $region34: #{graph_encoder_forward.3} parent=0
    _
  %s7 = ssub.s32 1, %s5
  %s8 = scalar_select 0, %s7, %s5
  // Predicated region
  $region2: #{graph_encoder_forward.3} parent=0 // pred_check
    _
  $region3: #{graph_encoder_forward.3} parent=0 // pred_check_branch
    %10 = sbr.rel (0) target = $region5
  $region4: #{graph_encoder_forward.3} parent=0 // pred_region
    _
  $region5: #{graph_encoder_forward.3} parent=0 // pred_fallthru
    _
  // Predicated region
  $region6: #{graph_encoder_forward.3} parent=0 // pred_check
    _
  $region7: #{graph_encoder_forward.3} parent=0 // pred_check_branch
    %12 = sbr.rel (0) target = $region9
  $region8: #{graph_encoder_forward.3} parent=0 // pred_region
    _
  $region9: #{graph_encoder_forward.3} parent=0 // pred_fallthru
    _
  // Predicated region
  $region10: #{graph_encoder_forward.3} parent=0 // pred_check
    _
  $region11: #{graph_encoder_forward.3} parent=0 // pred_check_branch
    %14 = sbr.rel (0) target = $region13
  $region12: #{graph_encoder_forward.3} parent=0 // pred_region
    _
  $region13: #{graph_encoder_forward.3} parent=0 // pred_fallthru
    _
  // Predicated region
  $region14: #{graph_encoder_forward.3} parent=0 // pred_check
    _
  $region15: #{graph_encoder_forward.3} parent=0 // pred_check_branch
    %16 = sbr.rel (0) target = $region17
  $region16: #{graph_encoder_forward.3} parent=0 // pred_region
    _
  $region17: #{graph_encoder_forward.3} parent=0 // pred_fallthru
    _
  %p18 = scmp.eq.s32.totalorder 0, 0
  // Predicated region
  $region18: #{graph_encoder_forward.3} parent=0 // pred_check
    %p19 = pneg %p18
  $region19: #{graph_encoder_forward.3} parent=0 // pred_check_branch
    %21 = sbr.rel (%p19) target = $region21
  $region20: #{graph_encoder_forward.3} parent=0 // pred_region
    %22 = vst [vmem:[#allocation2] sm:$0xff] 0.0
    %23 = vst [vmem:[#allocation2 + $0x8] sm:$0xff] 0.0
  $region21: #{graph_encoder_forward.3} parent=0 // pred_fallthru
    _
  %v24 = vld [vmem:[%s1] sm:$0xf]
  %v25 = vld [vmem:[%s1 + $0x4] sm:$0xf]
  %v26 = vld [vmem:[%s2] sm:$0xf]
  %v27 = vld [vmem:[%s2 + $0x4] sm:$0xf]
  %v28 = vld [vmem:[%s2 + $0x8] sm:$0xf]
  %v29 = vld [vmem:[%s2 + $0xc] sm:$0xf]
  %v30 = vld [vmem:[%s2 + $0x10] sm:$0xf]
  %v31 = vld [vmem:[%s2 + $0x14] sm:$0xf]
  %v32 = vld [vmem:[%s2 + $0x18] sm:$0xf]
  %v33 = vld [vmem:[%s2 + $0x1c] sm:$0xf]
  %v34 = vld [vmem:[%s2 + $0x20] sm:$0xf]
  %v35 = vld [vmem:[%s2 + $0x24] sm:$0xf]
  %v36 = vld [vmem:[%s2 + $0x28] sm:$0xf]
  %v37 = vld [vmem:[%s2 + $0x2c] sm:$0xf]
  %v38 = vld [vmem:[%s2 + $0x30] sm:$0xf]
  %v39 = vld [vmem:[%s2 + $0x34] sm:$0xf]
  %v40 = vld [vmem:[%s2 + $0x38] sm:$0xf]
  %v41 = vld [vmem:[%s2 + $0x3c] sm:$0xf]
  %v44 = vunpack.c.l.b16 %v24
  %v45 = vunpack.c.l.b16 %v25
  %v46 = vpack.c.b16 %v45, %v44
  %v64 = vunpack.c.l.b16 %v26
  %v65 = vunpack.c.l.b16 %v27
  %v66 = vunpack.c.l.b16 %v28
  %v67 = vunpack.c.l.b16 %v29
  %v68 = vunpack.c.l.b16 %v30
  %v69 = vunpack.c.l.b16 %v31
  %v70 = vunpack.c.l.b16 %v32
  %v71 = vunpack.c.l.b16 %v33
  %v72 = vunpack.c.l.b16 %v34
  %v73 = vunpack.c.l.b16 %v35
  %v74 = vunpack.c.l.b16 %v36
  %v75 = vunpack.c.l.b16 %v37
  %v76 = vunpack.c.l.b16 %v38
  %v77 = vunpack.c.l.b16 %v39
  %v78 = vunpack.c.l.b16 %v40
  %v79 = vunpack.c.l.b16 %v41
  %v80 = vpack.c.b16 %v65, %v64
  %v81 = vpack.c.b16 %v67, %v66
  %v82 = vpack.c.b16 %v69, %v68
  %v83 = vpack.c.b16 %v71, %v70
  %v84 = vpack.c.b16 %v73, %v72
  %v85 = vpack.c.b16 %v75, %v74
  %v86 = vpack.c.b16 %v77, %v76
  %v87 = vpack.c.b16 %v79, %v78
  %96 = vmatpush.bf16.msra.mxu0 %v87
  %97 = vmatpush.bf16.msra.mxu0 %v86
  %98 = vmatpush.bf16.msra.mxu0 %v85
  %99 = vmatpush.bf16.msra.mxu0 %v84
  %100 = vmatpush.bf16.msra.mxu0 %v83
  %101 = vmatpush.bf16.msra.mxu0 %v82
  %102 = vmatpush.bf16.msra.mxu0 %v81
  %103 = vmatpush.bf16.msra.mxu0 %v80
  %104 = vmatmul.bf16.gmra.mxu0 %v46
  %v105 = vpop.f32.mrf.mxu0
  %v106 = vadd.f32 0.0, %v105
  %v107 = vpop.f32.mrf.mxu0
  %v108 = vadd.f32 0.0, %v107
  %109 = vdwg.mxu0
  %v110 = vld [vmem:[#allocation2] sm:$0xff]
  %v111 = vld [vmem:[#allocation2 + $0x8] sm:$0xff]
  %v112 = vld [vmem:[%s0] sm:$0xf]
  %v113 = vld [vmem:[%s0 + $0x4] sm:$0xf]
  %v114 = vpack.c.bf16 %v108, %v106
  %v117 = vunpack.c.l.b16 %v112
  %v118 = vunpack.c.l.b16 %v113
  %v119 = vpack.c.b16 %v118, %v117
  %vm120 = vcmask 130048
  %v122 = vsel %vm120, %v119, 0
  %124 = vmatpush.bf16.msra.mxu0 0
  %125 = vmatpush.bf16.msra.mxu0 0
  %126 = vmatpush.bf16.msra.mxu0 0
  %127 = vmatpush.bf16.msra.mxu0 0
  %128 = vmatpush.bf16.msra.mxu0 0
  %129 = vmatpush.bf16.msra.mxu0 0
  %130 = vmatpush.bf16.msra.mxu0 0
  %131 = vmatpush.bf16.msra.mxu0 %v114
  %132 = vmatmul.bf16.gmra.mxu0 %v122
  %v133 = vpop.f32.mrf.mxu0
  %v134 = vadd.f32 0.0, %v133
  %v135 = vpop.f32.mrf.mxu0
  %v136 = vadd.f32 0.0, %v135
  %137 = vdwg.mxu0
  %v138 = vadd.f32 %v110, %v134
  %v139 = vadd.f32 %v111, %v136
  %140 = vst [vmem:[#allocation2] sm:$0xff] %v138
  %141 = vst [vmem:[#allocation2 + $0x8] sm:$0xff] %v139
  // Predicated region
  $region22: #{graph_encoder_forward.3} parent=0 // pred_check
    %p142 = pneg %p18
  $region23: #{graph_encoder_forward.3} parent=0 // pred_check_branch
    %144 = sbr.rel (%p142) target = $region25
  $region24: #{graph_encoder_forward.3} parent=0 // pred_region
    %v145 = vld [vmem:[#allocation2] sm:$0xff]
    %v146 = vld [vmem:[#allocation2 + $0x8] sm:$0xff]
    %v147 = vld [vmem:[%s3] sm:$0x1]
    %v149 = vperm.slane %v147, 0
    %v151 = vadd.f32 %v145, %v149
    %v152 = vadd.f32 %v146, %v149
    %v153 = vmax.f32 %v151, 0.0
    %v154 = vmax.f32 %v152, 0.0
    %v155 = vpack.c.bf16 %v153, %v153
    %v156 = vpack.c.bf16 %v154, %v154
    %157 = vst [vmem:[%s4] sm:$0xf] %v155
    %158 = vst [vmem:[%s4 + $0x4] sm:$0xf] %v156
  $region25: #{graph_encoder_forward.3} parent=0 // pred_fallthru
    _
  // Predicated region
  $region26: #{graph_encoder_forward.3} parent=0 // pred_check
    _
  $region27: #{graph_encoder_forward.3} parent=0 // pred_check_branch
    %160 = sbr.rel (0) target = $region29
  $region28: #{graph_encoder_forward.3} parent=0 // pred_region
    _
  $region29: #{graph_encoder_forward.3} parent=0 // pred_fallthru
    _
  // Predicated region
  $region30: #{graph_encoder_forward.3} parent=0 // pred_check
    _
  $region31: #{graph_encoder_forward.3} parent=0 // pred_check_branch
    %162 = sbr.rel (0) target = $region33
  $region32: #{graph_encoder_forward.3} parent=0 // pred_region
    _
  $region33: #{graph_encoder_forward.3} parent=0 // pred_fallthru
    _

// kernel: graph_encoder_forward.5
$region0: #{graph_encoder_forward.5}
  #allocation0 [shape = 'u32[]', space=smem, size = 0x4, offset = 0x4, fixed_abs, tag = 'smem constant byte address 0x4 - core index']
  #allocation1 [shape = 'u32[72,128]{1,0:T(1,128)}', space=vmem, size = 0x9000, scoped, tag = 'internal scratch']
  #allocation2 [shape = 'f32[16,128]{1,0:T(8,128)}', space=vmem, size = 0x2000, scoped, tag = 'scratch operand']
  %s0 = inlined_call_operand.vmem [shape: bf16[16,16], index: 0, kind: input, shape index: {}]
  %s1 = inlined_call_operand.vmem [shape: bf16[16,128], index: 1, kind: input, shape index: {}]
  %s2 = inlined_call_operand.vmem [shape: bf16[128,128], index: 2, kind: input, shape index: {}]
  %s3 = inlined_call_operand.vmem [shape: f32[1,128], index: 3, kind: input, shape index: {}]
  %s4 = inlined_call_operand.vmem [shape: bf16[16,128], index: 4, kind: output, shape index: {}]
  %s5 = sld [smem:[#allocation0]]
  $region38: #{graph_encoder_forward.5} parent=0
    _
  %s7 = ssub.s32 1, %s5
  %s8 = scalar_select 0, %s7, %s5
  // Predicated region
  $region2: #{graph_encoder_forward.5} parent=0 // pred_check
    _
  $region3: #{graph_encoder_forward.5} parent=0 // pred_check_branch
    %10 = sbr.rel (0) target = $region5
  $region4: #{graph_encoder_forward.5} parent=0 // pred_region
    _
  $region5: #{graph_encoder_forward.5} parent=0 // pred_fallthru
    _
  // Predicated region
  $region6: #{graph_encoder_forward.5} parent=0 // pred_check
    _
  $region7: #{graph_encoder_forward.5} parent=0 // pred_check_branch
    %12 = sbr.rel (0) target = $region9
  $region8: #{graph_encoder_forward.5} parent=0 // pred_region
    _
  $region9: #{graph_encoder_forward.5} parent=0 // pred_fallthru
    _
  // Predicated region
  $region10: #{graph_encoder_forward.5} parent=0 // pred_check
    _
  $region11: #{graph_encoder_forward.5} parent=0 // pred_check_branch
    %14 = sbr.rel (0) target = $region13
  $region12: #{graph_encoder_forward.5} parent=0 // pred_region
    _
  $region13: #{graph_encoder_forward.5} parent=0 // pred_fallthru
    _
  // Predicated region
  $region14: #{graph_encoder_forward.5} parent=0 // pred_check
    _
  $region15: #{graph_encoder_forward.5} parent=0 // pred_check_branch
    %16 = sbr.rel (0) target = $region17
  $region16: #{graph_encoder_forward.5} parent=0 // pred_region
    _
  $region17: #{graph_encoder_forward.5} parent=0 // pred_fallthru
    _
  %p18 = scmp.eq.s32.totalorder 0, 0
  // Predicated region
  $region18: #{graph_encoder_forward.5} parent=0 // pred_check
    %p19 = pneg %p18
  $region19: #{graph_encoder_forward.5} parent=0 // pred_check_branch
    %21 = sbr.rel (%p19) target = $region21
  $region20: #{graph_encoder_forward.5} parent=0 // pred_region
    %22 = vst [vmem:[#allocation2] sm:$0xff] 0.0
    %23 = vst [vmem:[#allocation2 + $0x8] sm:$0xff] 0.0
  $region21: #{graph_encoder_forward.5} parent=0 // pred_fallthru
    _
  %v24 = vld [vmem:[%s1] sm:$0xf]
  %v25 = vld [vmem:[%s1 + $0x4] sm:$0xf]
  %v26 = vld [vmem:[%s2] sm:$0xf]
  %v27 = vld [vmem:[%s2 + $0x4] sm:$0xf]
  %v28 = vld [vmem:[%s2 + $0x8] sm:$0xf]
  %v29 = vld [vmem:[%s2 + $0xc] sm:$0xf]
  %v30 = vld [vmem:[%s2 + $0x10] sm:$0xf]
  %v31 = vld [vmem:[%s2 + $0x14] sm:$0xf]
  %v32 = vld [vmem:[%s2 + $0x18] sm:$0xf]
  %v33 = vld [vmem:[%s2 + $0x1c] sm:$0xf]
  %v34 = vld [vmem:[%s2 + $0x20] sm:$0xf]
  %v35 = vld [vmem:[%s2 + $0x24] sm:$0xf]
  %v36 = vld [vmem:[%s2 + $0x28] sm:$0xf]
  %v37 = vld [vmem:[%s2 + $0x2c] sm:$0xf]
  %v38 = vld [vmem:[%s2 + $0x30] sm:$0xf]
  %v39 = vld [vmem:[%s2 + $0x34] sm:$0xf]
  %v40 = vld [vmem:[%s2 + $0x38] sm:$0xf]
  %v41 = vld [vmem:[%s2 + $0x3c] sm:$0xf]
  %v44 = vunpack.c.l.b16 %v24
  %v45 = vunpack.c.l.b16 %v25
  %v46 = vpack.c.b16 %v45, %v44
  %v64 = vunpack.c.l.b16 %v26
  %v65 = vunpack.c.l.b16 %v27
  %v66 = vunpack.c.l.b16 %v28
  %v67 = vunpack.c.l.b16 %v29
  %v68 = vunpack.c.l.b16 %v30
  %v69 = vunpack.c.l.b16 %v31
  %v70 = vunpack.c.l.b16 %v32
  %v71 = vunpack.c.l.b16 %v33
  %v72 = vunpack.c.l.b16 %v34
  %v73 = vunpack.c.l.b16 %v35
  %v74 = vunpack.c.l.b16 %v36
  %v75 = vunpack.c.l.b16 %v37
  %v76 = vunpack.c.l.b16 %v38
  %v77 = vunpack.c.l.b16 %v39
  %v78 = vunpack.c.l.b16 %v40
  %v79 = vunpack.c.l.b16 %v41
  %v80 = vpack.c.b16 %v65, %v64
  %v81 = vpack.c.b16 %v67, %v66
  %v82 = vpack.c.b16 %v69, %v68
  %v83 = vpack.c.b16 %v71, %v70
  %v84 = vpack.c.b16 %v73, %v72
  %v85 = vpack.c.b16 %v75, %v74
  %v86 = vpack.c.b16 %v77, %v76
  %v87 = vpack.c.b16 %v79, %v78
  %96 = vmatpush.bf16.msra.mxu0 %v87
  %97 = vmatpush.bf16.msra.mxu0 %v86
  %98 = vmatpush.bf16.msra.mxu0 %v85
  %99 = vmatpush.bf16.msra.mxu0 %v84
  %100 = vmatpush.bf16.msra.mxu0 %v83
  %101 = vmatpush.bf16.msra.mxu0 %v82
  %102 = vmatpush.bf16.msra.mxu0 %v81
  %103 = vmatpush.bf16.msra.mxu0 %v80
  %104 = vmatmul.bf16.gmra.mxu0 %v46
  %v105 = vpop.f32.mrf.mxu0
  %v106 = vadd.f32 0.0, %v105
  %v107 = vpop.f32.mrf.mxu0
  %v108 = vadd.f32 0.0, %v107
  %109 = vdwg.mxu0
  %v110 = vld [vmem:[#allocation2] sm:$0xff]
  %v111 = vld [vmem:[#allocation2 + $0x8] sm:$0xff]
  %v112 = vld [vmem:[%s0] sm:$0xf]
  %v113 = vld [vmem:[%s0 + $0x4] sm:$0xf]
  %v114 = vpack.c.bf16 %v108, %v106
  %v117 = vunpack.c.l.b16 %v112
  %v118 = vunpack.c.l.b16 %v113
  %v119 = vpack.c.b16 %v118, %v117
  %vm120 = vcmask 130048
  %v122 = vsel %vm120, %v119, 0
  %124 = vmatpush.bf16.msra.mxu0 0
  %125 = vmatpush.bf16.msra.mxu0 0
  %126 = vmatpush.bf16.msra.mxu0 0
  %127 = vmatpush.bf16.msra.mxu0 0
  %128 = vmatpush.bf16.msra.mxu0 0
  %129 = vmatpush.bf16.msra.mxu0 0
  %130 = vmatpush.bf16.msra.mxu0 0
  %131 = vmatpush.bf16.msra.mxu0 %v114
  %132 = vmatmul.bf16.gmra.mxu0 %v122
  %v133 = vpop.f32.mrf.mxu0
  %v134 = vadd.f32 0.0, %v133
  %v135 = vpop.f32.mrf.mxu0
  %v136 = vadd.f32 0.0, %v135
  %137 = vdwg.mxu0
  %v138 = vadd.f32 %v110, %v134
  %v139 = vadd.f32 %v111, %v136
  %140 = vst [vmem:[#allocation2] sm:$0xff] %v138
  %141 = vst [vmem:[#allocation2 + $0x8] sm:$0xff] %v139
  %p142 = scmp.eq.s32.totalorder 0, 0
  // Predicated region
  $region22: #{graph_encoder_forward.5} parent=0 // pred_check
    %p143 = pneg %p142
  $region23: #{graph_encoder_forward.5} parent=0 // pred_check_branch
    %145 = sbr.rel (%p143) target = $region25
  $region24: #{graph_encoder_forward.5} parent=0 // pred_region
    %v146 = vld [vmem:[#allocation2] sm:$0xff]
    %v147 = vld [vmem:[#allocation2 + $0x8] sm:$0xff]
    %v148 = vld [vmem:[%s1] sm:$0xf]
    %v149 = vld [vmem:[%s1 + $0x4] sm:$0xf]
    %v150 = vunpack.c.l.bf16 %v148
    %v151 = vunpack.c.l.bf16 %v149
    %v152 = vadd.f32 %v146, %v150
    %v153 = vadd.f32 %v147, %v151
    %154 = vst [vmem:[#allocation2] sm:$0xff] %v152
    %155 = vst [vmem:[#allocation2 + $0x8] sm:$0xff] %v153
  $region25: #{graph_encoder_forward.5} parent=0 // pred_fallthru
    _
  // Predicated region
  $region26: #{graph_encoder_forward.5} parent=0 // pred_check
    %p156 = pneg %p18
  $region27: #{graph_encoder_forward.5} parent=0 // pred_check_branch
    %158 = sbr.rel (%p156) target = $region29
  $region28: #{graph_encoder_forward.5} parent=0 // pred_region
    %v159 = vld [vmem:[#allocation2] sm:$0xff]
    %v160 = vld [vmem:[#allocation2 + $0x8] sm:$0xff]
    %v161 = vld [vmem:[%s3] sm:$0x1]
    %v163 = vperm.slane %v161, 0
    %v165 = vadd.f32 %v159, %v163
    %v166 = vadd.f32 %v160, %v163
    %v167 = vmax.f32 %v165, 0.0
    %v168 = vmax.f32 %v166, 0.0
    %v169 = vpack.c.bf16 %v167, %v167
    %v170 = vpack.c.bf16 %v168, %v168
    %171 = vst [vmem:[%s4] sm:$0xf] %v169
    %172 = vst [vmem:[%s4 + $0x4] sm:$0xf] %v170
  $region29: #{graph_encoder_forward.5} parent=0 // pred_fallthru
    _
  // Predicated region
  $region30: #{graph_encoder_forward.5} parent=0 // pred_check
    _
  $region31: #{graph_encoder_forward.5} parent=0 // pred_check_branch
    %174 = sbr.rel (0) target = $region33
  $region32: #{graph_encoder_forward.5} parent=0 // pred_region
    _
  $region33: #{graph_encoder_forward.5} parent=0 // pred_fallthru
    _
  // Predicated region
  $region34: #{graph_encoder_forward.5} parent=0 // pred_check
    _
  $region35: #{graph_encoder_forward.5} parent=0 // pred_check_branch
    %176 = sbr.rel (0) target = $region37
  $region36: #{graph_encoder_forward.5} parent=0 // pred_region
    _
  $region37: #{graph_encoder_forward.5} parent=0 // pred_fallthru
    _

</llo_original>
